<compile_context>
chip_gen: v7x
topology: tpu7x:2x2x1
jax: 0.10.0
libtpu: 0.0.40
codegen_flags: <defaults>
</compile_context>

<pallas_src>
import jax
import jax.numpy as jnp
from jax.experimental import pallas as pl
from jax.experimental.pallas import tpu as pltpu


_LANE = 128            # lane granularity for the last block dim
_SUBLANE = 8           # sublane granularity for the second-to-last block dim
_UNROLL_CIN_MAX = 16   # fully unroll channel FMAs up to this C_in; MXU above


def _round_down(x, m):
    return (x // m) * m


def _make_kernel_3d(c_in, c_out, bn, use_mxu):
    """Mode A: x_ref (BN, C_in, TS), w_ref (C_out, C_in), b_ref (C_out, 1),
    o_ref (BN, C_out, TS).  Spatial axis is lane-dense."""
    def kernel(x_ref, w_ref, b_ref, o_ref):
        x = x_ref[...].astype(jnp.float32)
        w = w_ref[...].astype(jnp.float32)
        b = b_ref[...].astype(jnp.float32)              # (C_out, 1)
        if use_mxu:
            # Larger C_in: MXU handles the channel reduction (bounds vreg
            # live ranges / XLU broadcasts; op is HBM-bound regardless).
            for i in range(bn):
                y = jnp.dot(w, x[i], preferred_element_type=jnp.float32) + b
                o_ref[i] = y.astype(o_ref.dtype)
        else:
            # Small C_in: broadcast FMAs on the VPU; bias folded into init.
            acc = b[None, :, :]                          # (1, C_out, 1)
            for ci in range(c_in):
                acc = acc + w[:, ci].reshape(1, c_out, 1) * x[:, ci:ci + 1, :]
            o_ref[...] = acc.astype(o_ref.dtype)
    return kernel


def _make_kernel_4d(c_in, c_out, bn, use_mxu):
    """Mode B (H-tiled fallback for S % 128 != 0):
    x_ref (BN, C_in, TH, W), o_ref (BN, C_out, TH, W)."""
    def kernel(x_ref, w_ref, b_ref, o_ref):
        x = x_ref[...].astype(jnp.float32)
        w = w_ref[...].astype(jnp.float32)
        b = b_ref[...].astype(jnp.float32)               # (C_out, 1)
        if use_mxu:
            th, wd = x.shape[-2], x.shape[-1]
            for i in range(bn):
                xi = x[i].reshape(c_in, th * wd)
                y = jnp.dot(w, xi, preferred_element_type=jnp.float32) + b
                o_ref[i] = y.reshape(c_out, th, wd).astype(o_ref.dtype)
        else:
            acc = b[None, :, :, None]                    # (1, C_out, 1, 1)
            for ci in range(c_in):
                acc = acc + (w[:, ci].reshape(1, c_out, 1, 1)
                             * x[:, ci:ci + 1, :, :])
            o_ref[...] = acc.astype(o_ref.dtype)
    return kernel


def outconv_forward(x_nchw, weight, bias, *,
                    tile_budget_bytes=8 * 1024 * 1024,
                    step_target_bytes=1 << 20,
                    vmem_limit_bytes=32 * 1024 * 1024,
                    max_batch_block=8):
    """1x1 conv forward (== nn.Conv2d(kernel_size=1), NCHW).

    x_nchw: (N, C_in, H, W); weight: (C_out, C_in, 1, 1); bias: (C_out,).
    Returns (N, C_out, H, W).
    """
    N, C_in, H, W = x_nchw.shape
    C_out = weight.shape[0]
    S = H * W
    dtype_bytes = x_nchw.dtype.itemsize

    w_mat = weight.reshape(C_out, C_in)
    b_col = bias.reshape(C_out, 1)
    use_mxu = C_in > _UNROLL_CIN_MAX
    total_io_bytes = (C_in + C_out) * N * S * dtype_bytes

    cost = pl.CostEstimate(
        flops=2 * N * S * C_in * C_out,
        transcendentals=0,
        bytes_accessed=(total_io_bytes
                        + w_mat.size * w_mat.dtype.itemsize
                        + b_col.size * b_col.dtype.itemsize))

    if S % _LANE == 0:
        # ---- Mode A: spatial axis flattened & lane-dense (free reshape). ----
        x3 = x_nchw.reshape(N, C_in, S)
        # Budget-driven spatial tile (double-buffered x + out per step).
        per_lane_bytes = 2 * (C_in + C_out) * dtype_bytes
        ts_budget = max(_LANE,
                        _round_down(tile_budget_bytes // per_lane_bytes, _LANE))
        TS = min(S, ts_budget)
        spatial_steps = pl.cdiv(S, TS)

        # Batch small images per step to amortize per-step overhead.
        BN = 1
        if spatial_steps == 1:
            step_bytes = (C_in + C_out) * TS * dtype_bytes
            BN = int(max(1, min(min(N, max_batch_block),
                                step_target_bytes // max(1, step_bytes))))
        # Keep >=2 grid steps when there is real work (one per v7x TensorCore).
        if (pl.cdiv(N, BN) * spatial_steps < 2
                and total_io_bytes >= 2 * step_target_bytes
                and S >= 2 * _LANE):
            TS = max(_LANE, _round_down(S // 2, _LANE))
            spatial_steps = pl.cdiv(S, TS)

        grid = (pl.cdiv(N, BN), spatial_steps)
        out3 = pl.pallas_call(
            _make_kernel_3d(C_in, C_out, BN, use_mxu),
            out_shape=jax.ShapeDtypeStruct((N, C_out, S), x_nchw.dtype),
            grid_spec=pltpu.PrefetchScalarGridSpec(
                num_scalar_prefetch=0,
                grid=grid,
                in_specs=[
                    pl.BlockSpec((BN, C_in, TS), lambda n, s: (n, 0, s)),
                    pl.BlockSpec((C_out, C_in), lambda n, s: (0, 0)),
                    pl.BlockSpec((C_out, 1), lambda n, s: (0, 0)),
                ],
                out_specs=pl.BlockSpec((BN, C_out, TS), lambda n, s: (n, 0, s)),
            ),
            compiler_params=pltpu.CompilerParams(
                dimension_semantics=("parallel", "parallel"),
                vmem_limit_bytes=vmem_limit_bytes),
            cost_estimate=cost,
        )(x3, w_mat, b_col)
        return out3.reshape(N, C_out, H, W)

    # ---- Mode B: S % 128 != 0 -> tile along H, keep W full-extent. ----
    per_row_bytes = 2 * (C_in + C_out) * W * dtype_bytes
    th_budget = max(_SUBLANE,
                    _round_down(tile_budget_bytes // per_row_bytes, _SUBLANE))
    TH = H if th_budget >= H else th_budget
    spatial_steps = pl.cdiv(H, TH)

    BN = 1
    if spatial_steps == 1:
        step_bytes = (C_in + C_out) * TH * W * dtype_bytes
        BN = int(max(1, min(min(N, max_batch_block),
                            step_target_bytes // max(1, step_bytes))))
    if (pl.cdiv(N, BN) * spatial_steps < 2
            and total_io_bytes >= 2 * step_target_bytes
            and H >= 2 * _SUBLANE):
        TH = max(_SUBLANE, _round_down(H // 2, _SUBLANE))
        spatial_steps = pl.cdiv(H, TH)

    grid = (pl.cdiv(N, BN), spatial_steps)
    out4 = pl.pallas_call(
        _make_kernel_4d(C_in, C_out, BN, use_mxu),
        out_shape=jax.ShapeDtypeStruct((N, C_out, H, W), x_nchw.dtype),
        grid_spec=pltpu.PrefetchScalarGridSpec(
            num_scalar_prefetch=0,
            grid=grid,
            in_specs=[
                pl.BlockSpec((BN, C_in, TH, W), lambda n, h: (n, 0, h, 0)),
                pl.BlockSpec((C_out, C_in), lambda n, h: (0, 0)),
                pl.BlockSpec((C_out, 1), lambda n, h: (0, 0)),
            ],
            out_specs=pl.BlockSpec((BN, C_out, TH, W),
                                   lambda n, h: (n, 0, h, 0)),
        ),
        compiler_params=pltpu.CompilerParams(
            dimension_semantics=("parallel", "parallel"),
            vmem_limit_bytes=vmem_limit_bytes),
        cost_estimate=cost,
    )(x_nchw, w_mat, b_col)
    return out4


if __name__ == "__main__":
    key = jax.random.PRNGKey(0)
    k_x, k_w, k_b = jax.random.split(key, 3)

    def ref_outconv(x, w, b):
        co = w.shape[0]
        return (jnp.einsum("nihw,oi->nohw", x, w.reshape(co, -1))
                + b.reshape(1, co, 1, 1))

    # OutConv(in_channels=4, out_channels=3) at a small spatial size.
    N, C_in, H, W = 2, 4, 16, 16
    C_out = 3
    x = jax.random.normal(k_x, (N, C_in, H, W), dtype=jnp.float32)
    bound = 1.0 / (C_in ** 0.5)
    weight = jax.random.uniform(k_w, (C_out, C_in, 1, 1), minval=-bound,
                                maxval=bound, dtype=jnp.float32)
    bias = jax.random.uniform(k_b, (C_out,), minval=-bound, maxval=bound,
                              dtype=jnp.float32)

    out = jax.block_until_ready(outconv_forward(x, weight, bias))
    assert out.shape == (N, C_out, H, W)
    assert jnp.allclose(out, ref_outconv(x, weight, bias), atol=1e-5, rtol=1e-5)

    # Shape-coverage checks (per review): partial edge tile, H-tiled fallback,
    # and the MXU channel-reduction path.
    w2 = jax.random.uniform(k_w, (3, 4, 1, 1), minval=-0.5, maxval=0.5,
                            dtype=jnp.float32)
    b2 = jax.random.uniform(k_b, (3,), minval=-0.5, maxval=0.5,
                            dtype=jnp.float32)

    # (a) S % TS != 0 partial edge block (force a small tile budget).
    x2 = jax.random.normal(k_x, (1, 4, 16, 24), dtype=jnp.float32)
    o2 = jax.block_until_ready(
        outconv_forward(x2, w2, b2, tile_budget_bytes=16 * 1024))
    assert jnp.allclose(o2, ref_outconv(x2, w2, b2), atol=1e-5, rtol=1e-5)

    # (b) S % 128 != 0 -> H-tiled fallback path.
    x3 = jax.random.normal(k_w, (2, 4, 10, 10), dtype=jnp.float32)
    o3 = jax.block_until_ready(outconv_forward(x3, w2, b2))
    assert jnp.allclose(o3, ref_outconv(x3, w2, b2), atol=1e-5, rtol=1e-5)

    # (c) Larger C_in -> MXU reduction path (looser tol: MXU matmul precision).
    x4 = jax.random.normal(k_b, (1, 32, 16, 16), dtype=jnp.float32)
    w4 = jax.random.uniform(k_w, (3, 32, 1, 1), minval=-0.2, maxval=0.2,
                            dtype=jnp.float32)
    o4 = jax.block_until_ready(outconv_forward(x4, w4, b2))
    assert jnp.allclose(o4, ref_outconv(x4, w4, b2), atol=2e-2, rtol=2e-2)

    print("KERNEL_OK")
</pallas_src>

<mosaic_0001>
module attributes {stable_mosaic.version = 11 : i64} {
  func.func @kernel(%arg0: i32, %arg1: i32, %arg2: memref<2x4x256xf32, #tpu.memory_space<vmem>>, %arg3: memref<3x4xf32, #tpu.memory_space<vmem>>, %arg4: memref<3x1xf32, #tpu.memory_space<vmem>>, %arg5: memref<2x3x256xf32, #tpu.memory_space<vmem>>) attributes {dimension_semantics = [#tpu.dimension_semantics<parallel>, #tpu.dimension_semantics<parallel>], iteration_bounds = array<i64: 1, 1>, scalar_prefetch = 0 : i64, scratch_operands = 0 : i64, tpu.core_type = #tpu.core_type<tc>, window_params = [{transform_indices = @transform_0, window_bounds = array<i64: 2, 4, 256>}, {pipeline_mode = #tpu.pipeline_mode<synchronous>, transform_indices = @transform_1, window_bounds = array<i64: 3, 4>}, {pipeline_mode = #tpu.pipeline_mode<synchronous>, transform_indices = @transform_2, window_bounds = array<i64: 3, 1>}, {transform_indices = @transform_3, window_bounds = array<i64: 2, 3, 256>}]} {
    %c0 = arith.constant 0 : index
    %c0_0 = arith.constant 0 : index
    %c0_1 = arith.constant 0 : index
    %0 = vector.load %arg2[%c0, %c0_0, %c0_1] : memref<2x4x256xf32, #tpu.memory_space<vmem>>, vector<2x4x256xf32>
    %c0_2 = arith.constant 0 : index
    %c0_3 = arith.constant 0 : index
    %1 = vector.load %arg3[%c0_2, %c0_3] : memref<3x4xf32, #tpu.memory_space<vmem>>, vector<3x4xf32>
    %c0_4 = arith.constant 0 : index
    %c0_5 = arith.constant 0 : index
    %2 = vector.load %arg4[%c0_4, %c0_5] : memref<3x1xf32, #tpu.memory_space<vmem>>, vector<3x1xf32>
    %3 = vector.shape_cast %2 : vector<3x1xf32> to vector<1x3x1xf32>
    %4 = vector.extract_strided_slice %1 {offsets = [0, 0], sizes = [3, 1], strides = [1, 1]} : vector<3x4xf32> to vector<3x1xf32>
    %5 = vector.shape_cast %4 : vector<3x1xf32> to vector<3xf32>
    %6 = vector.shape_cast %5 : vector<3xf32> to vector<1x3x1xf32>
    %7 = vector.extract_strided_slice %0 {offsets = [0, 0, 0], sizes = [2, 1, 256], strides = [1, 1, 1]} : vector<2x4x256xf32> to vector<2x1x256xf32>
    %8 = vector.broadcast %6 : vector<1x3x1xf32> to vector<2x3x256xf32>
    %9 = vector.broadcast %7 : vector<2x1x256xf32> to vector<2x3x256xf32>
    %10 = arith.mulf %8, %9 : vector<2x3x256xf32>
    %11 = vector.broadcast %3 : vector<1x3x1xf32> to vector<2x3x256xf32>
    %12 = arith.addf %11, %10 : vector<2x3x256xf32>
    %13 = vector.extract_strided_slice %1 {offsets = [0, 1], sizes = [3, 1], strides = [1, 1]} : vector<3x4xf32> to vector<3x1xf32>
    %14 = vector.shape_cast %13 : vector<3x1xf32> to vector<3xf32>
    %15 = vector.shape_cast %14 : vector<3xf32> to vector<1x3x1xf32>
    %16 = vector.extract_strided_slice %0 {offsets = [0, 1, 0], sizes = [2, 1, 256], strides = [1, 1, 1]} : vector<2x4x256xf32> to vector<2x1x256xf32>
    %17 = vector.broadcast %15 : vector<1x3x1xf32> to vector<2x3x256xf32>
    %18 = vector.broadcast %16 : vector<2x1x256xf32> to vector<2x3x256xf32>
    %19 = arith.mulf %17, %18 : vector<2x3x256xf32>
    %20 = arith.addf %12, %19 : vector<2x3x256xf32>
    %21 = vector.extract_strided_slice %1 {offsets = [0, 2], sizes = [3, 1], strides = [1, 1]} : vector<3x4xf32> to vector<3x1xf32>
    %22 = vector.shape_cast %21 : vector<3x1xf32> to vector<3xf32>
    %23 = vector.shape_cast %22 : vector<3xf32> to vector<1x3x1xf32>
    %24 = vector.extract_strided_slice %0 {offsets = [0, 2, 0], sizes = [2, 1, 256], strides = [1, 1, 1]} : vector<2x4x256xf32> to vector<2x1x256xf32>
    %25 = vector.broadcast %23 : vector<1x3x1xf32> to vector<2x3x256xf32>
    %26 = vector.broadcast %24 : vector<2x1x256xf32> to vector<2x3x256xf32>
    %27 = arith.mulf %25, %26 : vector<2x3x256xf32>
    %28 = arith.addf %20, %27 : vector<2x3x256xf32>
    %29 = vector.extract_strided_slice %1 {offsets = [0, 3], sizes = [3, 1], strides = [1, 1]} : vector<3x4xf32> to vector<3x1xf32>
    %30 = vector.shape_cast %29 : vector<3x1xf32> to vector<3xf32>
    %31 = vector.shape_cast %30 : vector<3xf32> to vector<1x3x1xf32>
    %32 = vector.extract_strided_slice %0 {offsets = [0, 3, 0], sizes = [2, 1, 256], strides = [1, 1, 1]} : vector<2x4x256xf32> to vector<2x1x256xf32>
    %33 = vector.broadcast %31 : vector<1x3x1xf32> to vector<2x3x256xf32>
    %34 = vector.broadcast %32 : vector<2x1x256xf32> to vector<2x3x256xf32>
    %35 = arith.mulf %33, %34 : vector<2x3x256xf32>
    %36 = arith.addf %28, %35 : vector<2x3x256xf32>
    %c0_6 = arith.constant 0 : index
    %c0_7 = arith.constant 0 : index
    %c0_8 = arith.constant 0 : index
    %37 = vector.load %arg5[%c0_6, %c0_7, %c0_8] : memref<2x3x256xf32, #tpu.memory_space<vmem>>, vector<2x3x256xf32>
    tpu.vector_store %arg5[%c0_6, %c0_7, %c0_8], %36 {strides = array<i32>} : memref<2x3x256xf32, #tpu.memory_space<vmem>>, vector<2x3x256xf32>,
    return
  }
  func.func @transform_0(%arg0: i32, %arg1: i32) -> (i32, i32, i32) {
    %c0_i32 = arith.constant 0 : i32
    %c0_i32_0 = arith.constant 0 : i32
    return %arg0, %c0_i32, %arg1 : i32, i32, i32
  }
  func.func @transform_1(%arg0: i32, %arg1: i32) -> (i32, i32) {
    %c0_i32 = arith.constant 0 : i32
    %c0_i32_0 = arith.constant 0 : i32
    %c0_i32_1 = arith.constant 0 : i32
    return %c0_i32, %c0_i32_0 : i32, i32
  }
  func.func @transform_2(%arg0: i32, %arg1: i32) -> (i32, i32) {
    %c0_i32 = arith.constant 0 : i32
    %c0_i32_0 = arith.constant 0 : i32
    %c0_i32_1 = arith.constant 0 : i32
    return %c0_i32, %c0_i32_0 : i32, i32
  }
  func.func @transform_3(%arg0: i32, %arg1: i32) -> (i32, i32, i32) {
    %c0_i32 = arith.constant 0 : i32
    %c0_i32_0 = arith.constant 0 : i32
    return %arg0, %c0_i32, %arg1 : i32, i32, i32
  }
}

</mosaic_0001>

<llo_original>
// kernel: tpu_custom_call.1
$region0: #{tpu_custom_call.1}
  #allocation0 [shape = 'u32[]', space=smem, size = 0x4, offset = 0x4, fixed_abs, tag = 'smem constant byte address 0x4 - core index']
  #allocation1 [shape = 'u32[144,128]{1,0:T(1,128)}', space=vmem, size = 0x12000, scoped, tag = 'internal scratch']
  %s0 = inlined_call_operand.hbm [shape: f32[2,4,256], index: 0, kind: input, shape index: {}]
  %s1 = inlined_call_operand.vmem [shape: f32[3,4], index: 1, kind: input, shape index: {}]
  %s2 = inlined_call_operand.vmem [shape: f32[3,1], index: 2, kind: input, shape index: {}]
  %s3 = inlined_call_operand.vmem [shape: f32[2,3,256], index: 3, kind: output, shape index: {}]
  %s4 = sld [smem:[#allocation0]]
  $region26: #{tpu_custom_call.1} parent=0
    _
  %s6 = ssub.s32 1, %s4
  %s7 = scalar_select 0, %s6, %s4
  $region1: #{tpu_custom_call.1} parent=0
    #allocation2 [shape = 'u8[8192]{0}', space=vmem, size = 0x2000, scoped, tag = 'input window, operand 0, single buffered']
    #allocation3 [shape = 's32[1]{0}', space=sflag, size = 0x4, scoped, tag = 'scoped memory for tpu_custom_call.1']
    %8 = vsyncpa [#allocation3], 0
    // Predicated region
    $region2: #{tpu_custom_call.1} parent=1 // pred_check
      _
    $region3: #{tpu_custom_call.1} parent=1 // pred_check_branch
      %10 = sbr.rel (0) target = $region5
    $region4: #{tpu_custom_call.1} parent=1 // pred_region
      %s12 = ssub.s32 256, 256
      %13 = vsyncadd [#allocation3], %s12
      %s14 = sshll.u32 [#allocation2], 4
      %s15 = int_to_ptr.vmem [resolvable:$true] %s14
      %20 = dma.hbm_to_vmem [thread:$0]  %s0, 256, %s15, [#allocation3], 128, 128, 8
    $region5: #{tpu_custom_call.1} parent=1 // pred_fallthru
      _
    // Predicated region
    $region6: #{tpu_custom_call.1} parent=1 // pred_check
      _
    $region7: #{tpu_custom_call.1} parent=1 // pred_check_branch
      %22 = sbr.rel (0) target = $region9
    $region8: #{tpu_custom_call.1} parent=1 // pred_region
      _
    $region9: #{tpu_custom_call.1} parent=1 // pred_fallthru
      _
    // Predicated region
    $region10: #{tpu_custom_call.1} parent=1 // pred_check
      _
    $region11: #{tpu_custom_call.1} parent=1 // pred_check_branch
      %24 = sbr.rel (0) target = $region13
    $region12: #{tpu_custom_call.1} parent=1 // pred_region
      _
    $region13: #{tpu_custom_call.1} parent=1 // pred_fallthru
      _
    // Predicated region
    $region14: #{tpu_custom_call.1} parent=1 // pred_check
      _
    $region15: #{tpu_custom_call.1} parent=1 // pred_check_branch
      %26 = sbr.rel (0) target = $region17
    $region16: #{tpu_custom_call.1} parent=1 // pred_region
      %27 = dma.done [#allocation3], 256
    $region17: #{tpu_custom_call.1} parent=1 // pred_fallthru
      _
    %v28 = vld [vmem:[#allocation2] sm:$0xff]
    %v29 = vld [vmem:[#allocation2 + $0x8] sm:$0xff]
    %v30 = vld [vmem:[%s1] sm:$0x7]
    %v31 = vld [vmem:[%s2] sm:$0x7]
    %33 = vset.pattern.permute.xlu0 0
    %34 = vperm.xlu0 %33, %v30
    %v35 = vpop.permute.xlu0 %34
    %v39 = vlaneseq
    %v40 = vshrl.u32 %v39, 7
    %v41 = vsub.s32 0, %v40
    %v42 = vrot.slane %v28, %v41
    %v43 = vlaneseq
    %v44 = vshrl.u32 %v43, 7
    %v45 = vsub.s32 4, %v44
    %v46 = vrot.slane %v28, %v45
    %v47 = vlaneseq
    %v48 = vshrl.u32 %v47, 7
    %v49 = vsub.s32 0, %v48
    %v50 = vrot.slane %v29, %v49
    %v51 = vlaneseq
    %v52 = vshrl.u32 %v51, 7
    %v53 = vsub.s32 4, %v52
    %v54 = vrot.slane %v29, %v53
    %v59 = vlaneseq
    %v60 = vshrl.u32 %v59, 7
    %v61 = vsub.s32 0, %v60
    %v62 = vrot.slane %v42, %v61
    %v63 = vlaneseq
    %v64 = vshrl.u32 %v63, 7
    %v65 = vsub.s32 0, %v64
    %v66 = vrot.slane %v46, %v65
    %v67 = vlaneseq
    %v68 = vshrl.u32 %v67, 7
    %v69 = vsub.s32 0, %v68
    %v70 = vrot.slane %v50, %v69
    %v71 = vlaneseq
    %v72 = vshrl.u32 %v71, 7
    %v73 = vsub.s32 0, %v72
    %v74 = vrot.slane %v54, %v73
    %v75 = vmul.f32 %v35, %v62
    %v76 = vmul.f32 %v35, %v66
    %v77 = vmul.f32 %v35, %v70
    %v78 = vmul.f32 %v35, %v74
    %80 = vset.pattern.permute.xlu0 0
    %81 = vperm.xlu0 %80, %v31
    %v82 = vpop.permute.xlu0 %81
    %v84 = vadd.f32 %v82, %v75
    %v85 = vadd.f32 %v82, %v76
    %v86 = vadd.f32 %v82, %v77
    %v87 = vadd.f32 %v82, %v78
    %88 = vset.pattern.permute.xlu0 1
    %89 = vperm.xlu0 %88, %v30
    %v90 = vpop.permute.xlu0 %89
    %v92 = vlaneseq
    %v93 = vshrl.u32 %v92, 7
    %v94 = vsub.s32 1, %v93
    %v95 = vrot.slane %v28, %v94
    %v96 = vlaneseq
    %v97 = vshrl.u32 %v96, 7
    %v98 = vsub.s32 5, %v97
    %v99 = vrot.slane %v28, %v98
    %v100 = vlaneseq
    %v101 = vshrl.u32 %v100, 7
    %v102 = vsub.s32 1, %v101
    %v103 = vrot.slane %v29, %v102
    %v104 = vlaneseq
    %v105 = vshrl.u32 %v104, 7
    %v106 = vsub.s32 5, %v105
    %v107 = vrot.slane %v29, %v106
    %v112 = vlaneseq
    %v113 = vshrl.u32 %v112, 7
    %v114 = vsub.s32 1, %v113
    %v115 = vrot.slane %v95, %v114
    %v116 = vlaneseq
    %v117 = vshrl.u32 %v116, 7
    %v118 = vsub.s32 1, %v117
    %v119 = vrot.slane %v99, %v118
    %v120 = vlaneseq
    %v121 = vshrl.u32 %v120, 7
    %v122 = vsub.s32 1, %v121
    %v123 = vrot.slane %v103, %v122
    %v124 = vlaneseq
    %v125 = vshrl.u32 %v124, 7
    %v126 = vsub.s32 1, %v125
    %v127 = vrot.slane %v107, %v126
    %v128 = vmul.f32 %v90, %v115
    %v129 = vmul.f32 %v90, %v119
    %v130 = vmul.f32 %v90, %v123
    %v131 = vmul.f32 %v90, %v127
    %v132 = vadd.f32 %v84, %v128
    %v133 = vadd.f32 %v85, %v129
    %v134 = vadd.f32 %v86, %v130
    %v135 = vadd.f32 %v87, %v131
    %136 = vset.pattern.permute.xlu0 2
    %137 = vperm.xlu0 %136, %v30
    %v138 = vpop.permute.xlu0 %137
    %v140 = vlaneseq
    %v141 = vshrl.u32 %v140, 7
    %v142 = vsub.s32 2, %v141
    %v143 = vrot.slane %v28, %v142
    %v144 = vlaneseq
    %v145 = vshrl.u32 %v144, 7
    %v146 = vsub.s32 6, %v145
    %v147 = vrot.slane %v28, %v146
    %v148 = vlaneseq
    %v149 = vshrl.u32 %v148, 7
    %v150 = vsub.s32 2, %v149
    %v151 = vrot.slane %v29, %v150
    %v152 = vlaneseq
    %v153 = vshrl.u32 %v152, 7
    %v154 = vsub.s32 6, %v153
    %v155 = vrot.slane %v29, %v154
    %v160 = vlaneseq
    %v161 = vshrl.u32 %v160, 7
    %v162 = vsub.s32 2, %v161
    %v163 = vrot.slane %v143, %v162
    %v164 = vlaneseq
    %v165 = vshrl.u32 %v164, 7
    %v166 = vsub.s32 2, %v165
    %v167 = vrot.slane %v147, %v166
    %v168 = vlaneseq
    %v169 = vshrl.u32 %v168, 7
    %v170 = vsub.s32 2, %v169
    %v171 = vrot.slane %v151, %v170
    %v172 = vlaneseq
    %v173 = vshrl.u32 %v172, 7
    %v174 = vsub.s32 2, %v173
    %v175 = vrot.slane %v155, %v174
    %v176 = vmul.f32 %v138, %v163
    %v177 = vmul.f32 %v138, %v167
    %v178 = vmul.f32 %v138, %v171
    %v179 = vmul.f32 %v138, %v175
    %v180 = vadd.f32 %v132, %v176
    %v181 = vadd.f32 %v133, %v177
    %v182 = vadd.f32 %v134, %v178
    %v183 = vadd.f32 %v135, %v179
    %184 = vset.pattern.permute.xlu0 3
    %185 = vperm.xlu0 %184, %v30
    %v186 = vpop.permute.xlu0 %185
    %v188 = vlaneseq
    %v189 = vshrl.u32 %v188, 7
    %v190 = vsub.s32 3, %v189
    %v191 = vrot.slane %v28, %v190
    %v192 = vlaneseq
    %v193 = vshrl.u32 %v192, 7
    %v194 = vsub.s32 7, %v193
    %v195 = vrot.slane %v28, %v194
    %v196 = vlaneseq
    %v197 = vshrl.u32 %v196, 7
    %v198 = vsub.s32 3, %v197
    %v199 = vrot.slane %v29, %v198
    %v200 = vlaneseq
    %v201 = vshrl.u32 %v200, 7
    %v202 = vsub.s32 7, %v201
    %v203 = vrot.slane %v29, %v202
    %v208 = vlaneseq
    %v209 = vshrl.u32 %v208, 7
    %v210 = vsub.s32 3, %v209
    %v211 = vrot.slane %v191, %v210
    %v212 = vlaneseq
    %v213 = vshrl.u32 %v212, 7
    %v214 = vsub.s32 3, %v213
    %v215 = vrot.slane %v195, %v214
    %v216 = vlaneseq
    %v217 = vshrl.u32 %v216, 7
    %v218 = vsub.s32 3, %v217
    %v219 = vrot.slane %v199, %v218
    %v220 = vlaneseq
    %v221 = vshrl.u32 %v220, 7
    %v222 = vsub.s32 3, %v221
    %v223 = vrot.slane %v203, %v222
    %v224 = vmul.f32 %v186, %v211
    %v225 = vmul.f32 %v186, %v215
    %v226 = vmul.f32 %v186, %v219
    %v227 = vmul.f32 %v186, %v223
    %v228 = vadd.f32 %v180, %v224
    %v229 = vadd.f32 %v181, %v225
    %v230 = vadd.f32 %v182, %v226
    %v231 = vadd.f32 %v183, %v227
    %v236 = vcombine.low %v228, %v229
    %v237 = vcombine.low %v230, %v231
    %240 = vst [vmem:[%s3] sm:$0x77] %v236
    %241 = vst [vmem:[%s3 + $0x8] sm:$0x77] %v237
    // Predicated region
    $region18: #{tpu_custom_call.1} parent=1 // pred_check
      _
    $region19: #{tpu_custom_call.1} parent=1 // pred_check_branch
      %243 = sbr.rel (0) target = $region21
    $region20: #{tpu_custom_call.1} parent=1 // pred_region
      _
    $region21: #{tpu_custom_call.1} parent=1 // pred_fallthru
      _
    // Predicated region
    $region22: #{tpu_custom_call.1} parent=1 // pred_check
      _
    $region23: #{tpu_custom_call.1} parent=1 // pred_check_branch
      %245 = sbr.rel (0) target = $region25
    $region24: #{tpu_custom_call.1} parent=1 // pred_region
      _
    $region25: #{tpu_custom_call.1} parent=1 // pred_fallthru
      _
    %246 = vsyncpa [#allocation3], 1

</llo_original>
